<compile_context>
chip_gen: v5e
topology: v5e:2x2
jax: 0.10.0
libtpu: 0.0.40
codegen_flags: <defaults>
</compile_context>

<pallas_src>
import jax
import jax.numpy as jnp
from jax.experimental import pallas as pl
from jax.experimental.pallas import tpu as pltpu


# ----------------------------- Pallas kernel ---------------------------------
def attn_classifier_kernel(
    z_ref,                      # [B, D]
    bias_ref,                   # [S*B, S*B]  additive attention mask (0 / -1e30)
    pool_ref,                   # [B, S*B]    block-averaging matrix (1/S per valid entry)
    wtok_ref, btok_ref,         # [D, S*D], [1, S*D]
    wqkv_ref, bqkv_ref,         # [D, 3D], [1, 3D]
    wo_ref, bo_ref,             # [D, D], [1, D]
    g1_ref, be1_ref,            # LayerNorm 1 affine [1, D]
    g2_ref, be2_ref,            # LayerNorm 2 affine [1, D]
    fw1_ref, fb1_ref,           # [D, 4D], [1, 4D]
    fw2_ref, fb2_ref,           # [4D, D], [1, D]
    hw1_ref, hb1_ref,           # [D, 64], [1, 64]
    hw2_ref, hb2_ref,           # [64, C], [1, C]
    o_ref,                      # [B, C]
):
    z = z_ref[...]                              # [B, D]
    B, D = z.shape
    SD = btok_ref.shape[1]
    S = SD // D
    scale = 1.0 / (float(D) ** 0.5)             # num_heads=1 -> head_dim = D
    eps = 1e-5

    # ---- token projection: one matmul, then stack tokens of all batch elems -------------
    # tok[b, s*D:(s+1)*D] = token s of batch element b
    tok = jnp.dot(z, wtok_ref[...], preferred_element_type=jnp.float32) + btok_ref[...]
    # stacked rows in s-major order: row (s*B + b) <-> token s of batch b
    x = jnp.concatenate([tok[:, s * D:(s + 1) * D] for s in range(S)], axis=0)  # [S*B, D]

    # ---- fused Q/K/V projection ----------------------------------------------------------
    qkv = jnp.dot(x, wqkv_ref[...], preferred_element_type=jnp.float32) + bqkv_ref[...]
    q = qkv[:, 0 * D:1 * D]
    k = qkv[:, 1 * D:2 * D]
    v = qkv[:, 2 * D:3 * D]

    # ---- block-diagonal self-attention (softmax over same-batch tokens only) -------------
    scores = jax.lax.dot_general(
        q, k, (((1,), (1,)), ((), ())), preferred_element_type=jnp.float32
    ) * scale                                                    # [S*B, S*B]
    scores = scores + bias_ref[...]                              # mask cross-batch entries
    scores = scores - jnp.max(scores, axis=-1, keepdims=True)
    p = jnp.exp(scores)
    p = p * pl.reciprocal(jnp.sum(p, axis=-1, keepdims=True), approx=True)
    attn = jnp.dot(p, v, preferred_element_type=jnp.float32)                     # [S*B, D]
    attn = jnp.dot(attn, wo_ref[...], preferred_element_type=jnp.float32) + bo_ref[...]

    # ---- residual + LayerNorm 1 -----------------------------------------------------------
    h = x + attn
    mu = jnp.mean(h, axis=-1, keepdims=True)
    var = jnp.mean((h - mu) ** 2, axis=-1, keepdims=True)
    h = (h - mu) * jax.lax.rsqrt(var + eps) * g1_ref[...] + be1_ref[...]

    # ---- feed-forward ----------------------------------------------------------------------
    f = jnp.dot(h, fw1_ref[...], preferred_element_type=jnp.float32) + fb1_ref[...]
    f = jnp.maximum(f, 0.0)
    f = jnp.dot(f, fw2_ref[...], preferred_element_type=jnp.float32) + fb2_ref[...]

    # ---- residual + LayerNorm 2 -----------------------------------------------------------
    h2 = h + f
    mu2 = jnp.mean(h2, axis=-1, keepdims=True)
    var2 = jnp.mean((h2 - mu2) ** 2, axis=-1, keepdims=True)
    h2 = (h2 - mu2) * jax.lax.rsqrt(var2 + eps) * g2_ref[...] + be2_ref[...]

    # ---- mean pooling over seq via block-averaging matmul ---------------------------------
    pooled = jnp.dot(pool_ref[...], h2, preferred_element_type=jnp.float32)       # [B, D]

    # ---- MLP head (dropout = identity at inference) ----------------------------------------
    m = jnp.dot(pooled, hw1_ref[...], preferred_element_type=jnp.float32) + hb1_ref[...]
    m = jnp.maximum(m, 0.0)
    logits = jnp.dot(m, hw2_ref[...], preferred_element_type=jnp.float32) + hb2_ref[...]

    o_ref[...] = logits                                                            # [B, C]


# ----------------------------- one-time parameter re-layout ------------------
def prepare_params(prm, B, D, S, C):
    """Re-lay PyTorch-shaped parameters for right-multiplication and build the tiny
    attention-mask / pooling constants. Executed ONCE (hoisted out of the forward)."""
    Wq, Wk, Wv = prm["W_in"][:D], prm["W_in"][D:2 * D], prm["W_in"][2 * D:]

    # s-major stacked-row batch ids: row (s*B + b) belongs to batch b
    batch_id = jnp.arange(B * S, dtype=jnp.int32) % B
    same = batch_id[:, None] == batch_id[None, :]
    attn_bias = jnp.where(same, 0.0, -1e30).astype(jnp.float32)                  # [S*B, S*B]
    pool = (jnp.arange(B, dtype=jnp.int32)[:, None] == batch_id[None, :])
    pool = pool.astype(jnp.float32) / float(S)                                   # [B, S*B]

    return {
        "attn_bias": attn_bias,
        "pool": pool,
        "wtok": prm["W_tok"].T,                        # [D, S*D]
        "btok": prm["b_tok"].reshape(1, S * D),
        "wqkv": jnp.concatenate([Wq.T, Wk.T, Wv.T], axis=1),   # [D, 3D]
        "bqkv": prm["b_in"].reshape(1, 3 * D),
        "wo": prm["W_o"].T, "bo": prm["b_o"].reshape(1, D),
        "g1": prm["g1"].reshape(1, D), "be1": prm["be1"].reshape(1, D),
        "g2": prm["g2"].reshape(1, D), "be2": prm["be2"].reshape(1, D),
        "fw1": prm["W1"].T, "fb1": prm["b1"].reshape(1, 4 * D),
        "fw2": prm["W2"].T, "fb2": prm["b2"].reshape(1, D),
        "hw1": prm["H1"].T, "hb1": prm["hb1"].reshape(1, 64),
        "hw2": prm["H2"].T, "hb2": prm["hb2"].reshape(1, C),
    }


# ----------------------------- wrapper ---------------------------------------
def attention_classifier_pallas(z, kp):
    """z: [B, D] float32, kp: prepare_params(...) output -> logits [B, num_classes]."""
    B, D = z.shape
    C = kp["hw2"].shape[1]

    inputs = [
        z, kp["attn_bias"], kp["pool"],
        kp["wtok"], kp["btok"],
        kp["wqkv"], kp["bqkv"],
        kp["wo"], kp["bo"],
        kp["g1"], kp["be1"],
        kp["g2"], kp["be2"],
        kp["fw1"], kp["fb1"],
        kp["fw2"], kp["fb2"],
        kp["hw1"], kp["hb1"],
        kp["hw2"], kp["hb2"],
    ]

    vmem = pltpu.MemorySpace.VMEM
    # Single program (no grid): everything fits comfortably in VMEM at these sizes, weights are
    # resident once (no double-buffering), and the full [B, C] logits slab is stored once.
    return pl.pallas_call(
        attn_classifier_kernel,
        out_shape=jax.ShapeDtypeStruct((B, C), jnp.float32),
        in_specs=[pl.BlockSpec(memory_space=vmem) for _ in inputs],
        out_specs=pl.BlockSpec(memory_space=vmem),
    )(*inputs)


# ----------------------------- reference (plain JAX) -------------------------
def reference_forward(z, prm, seq_len, num_classes):
    B, D = z.shape
    S = seq_len

    def ln(x, g, b):
        mu = x.mean(-1, keepdims=True)
        var = ((x - mu) ** 2).mean(-1, keepdims=True)
        return (x - mu) / jnp.sqrt(var + 1e-5) * g + b

    tokens = (z @ prm["W_tok"].T + prm["b_tok"]).reshape(B, S, D)
    Wq, Wk, Wv = prm["W_in"][:D], prm["W_in"][D:2 * D], prm["W_in"][2 * D:]
    bq, bk, bv = prm["b_in"][:D], prm["b_in"][D:2 * D], prm["b_in"][2 * D:]
    q = tokens @ Wq.T + bq
    k = tokens @ Wk.T + bk
    v = tokens @ Wv.T + bv
    scores = jnp.einsum("bsd,btd->bst", q, k) / jnp.sqrt(jnp.float32(D))
    p = jax.nn.softmax(scores, axis=-1)
    attn = jnp.einsum("bst,btd->bsd", p, v) @ prm["W_o"].T + prm["b_o"]
    h = ln(tokens + attn, prm["g1"], prm["be1"])
    f = jnp.maximum(h @ prm["W1"].T + prm["b1"], 0.0) @ prm["W2"].T + prm["b2"]
    h2 = ln(h + f, prm["g2"], prm["be2"])
    pooled = h2.mean(axis=1)
    m = jnp.maximum(pooled @ prm["H1"].T + prm["hb1"], 0.0)
    return m @ prm["H2"].T + prm["hb2"]


# ----------------------------- parameter init --------------------------------
def init_params(key, D, S, C):
    ks = jax.random.split(key, 16)

    def rnd(k, shape, scale=0.05):
        return jax.random.normal(k, shape, dtype=jnp.float32) * scale

    return {
        # token_proj: Linear(D, S*D)
        "W_tok": rnd(ks[0], (S * D, D)), "b_tok": rnd(ks[1], (S * D,)),
        # MultiheadAttention (num_heads=1): in_proj [3D, D], out_proj [D, D]
        "W_in": rnd(ks[2], (3 * D, D)), "b_in": rnd(ks[3], (3 * D,)),
        "W_o": rnd(ks[4], (D, D)), "b_o": rnd(ks[5], (D,)),
        # LayerNorms (PyTorch default init)
        "g1": jnp.ones((D,), jnp.float32), "be1": jnp.zeros((D,), jnp.float32),
        "g2": jnp.ones((D,), jnp.float32), "be2": jnp.zeros((D,), jnp.float32),
        # Feed-forward: Linear(D, 4D), Linear(4D, D)
        "W1": rnd(ks[6], (4 * D, D)), "b1": rnd(ks[7], (4 * D,)),
        "W2": rnd(ks[8], (D, 4 * D)), "b2": rnd(ks[9], (D,)),
        # MLP head: Linear(D, 64), Linear(64, C)
        "H1": rnd(ks[10], (64, D)), "hb1": rnd(ks[11], (64,)),
        "H2": rnd(ks[12], (C, 64)), "hb2": rnd(ks[13], (C,)),
    }


if __name__ == "__main__":
    B, D, S, C = 2, 32, 4, 1          # batch, latent_dim, seq_len, num_classes

    key = jax.random.PRNGKey(0)
    kz, kp_key = jax.random.split(key)
    z = jax.random.normal(kz, (B, D), dtype=jnp.float32)
    prm = init_params(kp_key, D, S, C)

    # one-time parameter re-layout (hoisted out of the forward pass)
    kparams = jax.tree_util.tree_map(jax.block_until_ready, prepare_params(prm, B, D, S, C))

    fwd = jax.jit(attention_classifier_pallas)
    logits = jax.block_until_ready(fwd(z, kparams))

    ref = reference_forward(z, prm, S, C)
    assert logits.shape == (B, C)
    assert jnp.allclose(logits, ref, rtol=1e-2, atol=1e-2), (logits, ref)

    print("KERNEL_OK")
</pallas_src>

<mosaic_0001>
module attributes {stable_mosaic.version = 11 : i64} {
  func.func @attn_classifier_kernel(%arg0: memref<2x32xf32, #tpu.memory_space<vmem>>, %arg1: memref<8x8xf32, #tpu.memory_space<vmem>>, %arg2: memref<2x8xf32, #tpu.memory_space<vmem>>, %arg3: memref<32x128xf32, #tpu.memory_space<vmem>>, %arg4: memref<1x128xf32, #tpu.memory_space<vmem>>, %arg5: memref<32x96xf32, #tpu.memory_space<vmem>>, %arg6: memref<1x96xf32, #tpu.memory_space<vmem>>, %arg7: memref<32x32xf32, #tpu.memory_space<vmem>>, %arg8: memref<1x32xf32, #tpu.memory_space<vmem>>, %arg9: memref<1x32xf32, #tpu.memory_space<vmem>>, %arg10: memref<1x32xf32, #tpu.memory_space<vmem>>, %arg11: memref<1x32xf32, #tpu.memory_space<vmem>>, %arg12: memref<1x32xf32, #tpu.memory_space<vmem>>, %arg13: memref<32x128xf32, #tpu.memory_space<vmem>>, %arg14: memref<1x128xf32, #tpu.memory_space<vmem>>, %arg15: memref<128x32xf32, #tpu.memory_space<vmem>>, %arg16: memref<1x32xf32, #tpu.memory_space<vmem>>, %arg17: memref<32x64xf32, #tpu.memory_space<vmem>>, %arg18: memref<1x64xf32, #tpu.memory_space<vmem>>, %arg19: memref<64x1xf32, #tpu.memory_space<vmem>>, %arg20: memref<1x1xf32, #tpu.memory_space<vmem>>, %arg21: memref<2x1xf32, #tpu.memory_space<vmem>>) attributes {dimension_semantics = [], scalar_prefetch = 0 : i64, scratch_operands = 0 : i64, tpu.core_type = #tpu.core_type<tc>} {
    %c0 = arith.constant 0 : index
    %c0_0 = arith.constant 0 : index
    %0 = vector.load %arg0[%c0, %c0_0] : memref<2x32xf32, #tpu.memory_space<vmem>>, vector<2x32xf32>
    %c0_1 = arith.constant 0 : index
    %c0_2 = arith.constant 0 : index
    %1 = vector.load %arg3[%c0_1, %c0_2] : memref<32x128xf32, #tpu.memory_space<vmem>>, vector<32x128xf32>
    %cst = arith.constant dense<0.000000e+00> : vector<2x128xf32>
    %2 = tpu.matmul %0, %1, %cst {dimension_numbers = #tpu.dot_dimension_numbers<[1], [0], [0], [1], [0, 0, 1, 1], [], []>} : vector<2x32xf32>, vector<32x128xf32>, vector<2x128xf32> -> vector<2x128xf32>
    %c0_3 = arith.constant 0 : index
    %c0_4 = arith.constant 0 : index
    %3 = vector.load %arg4[%c0_3, %c0_4] : memref<1x128xf32, #tpu.memory_space<vmem>>, vector<1x128xf32>
    %4 = vector.broadcast %3 : vector<1x128xf32> to vector<2x128xf32>
    %5 = arith.addf %2, %4 : vector<2x128xf32>
    %6 = vector.extract_strided_slice %5 {offsets = [0, 0], sizes = [2, 32], strides = [1, 1]} : vector<2x128xf32> to vector<2x32xf32>
    %7 = vector.extract_strided_slice %5 {offsets = [0, 32], sizes = [2, 32], strides = [1, 1]} : vector<2x128xf32> to vector<2x32xf32>
    %8 = vector.extract_strided_slice %5 {offsets = [0, 64], sizes = [2, 32], strides = [1, 1]} : vector<2x128xf32> to vector<2x32xf32>
    %9 = vector.extract_strided_slice %5 {offsets = [0, 96], sizes = [2, 32], strides = [1, 1]} : vector<2x128xf32> to vector<2x32xf32>
    %10 = tpu.concatenate %6, %7, %8, %9 in 0 : vector<2x32xf32>, vector<2x32xf32>, vector<2x32xf32>, vector<2x32xf32> -> vector<8x32xf32>
    %c0_5 = arith.constant 0 : index
    %c0_6 = arith.constant 0 : index
    %11 = vector.load %arg5[%c0_5, %c0_6] : memref<32x96xf32, #tpu.memory_space<vmem>>, vector<32x96xf32>
    %cst_7 = arith.constant dense<0.000000e+00> : vector<8x96xf32>
    %12 = tpu.matmul %10, %11, %cst_7 {dimension_numbers = #tpu.dot_dimension_numbers<[1], [0], [0], [1], [0, 0, 1, 1], [], []>} : vector<8x32xf32>, vector<32x96xf32>, vector<8x96xf32> -> vector<8x96xf32>
    %c0_8 = arith.constant 0 : index
    %c0_9 = arith.constant 0 : index
    %13 = vector.load %arg6[%c0_8, %c0_9] : memref<1x96xf32, #tpu.memory_space<vmem>>, vector<1x96xf32>
    %14 = vector.broadcast %13 : vector<1x96xf32> to vector<8x96xf32>
    %15 = arith.addf %12, %14 : vector<8x96xf32>
    %16 = vector.extract_strided_slice %15 {offsets = [0, 0], sizes = [8, 32], strides = [1, 1]} : vector<8x96xf32> to vector<8x32xf32>
    %17 = vector.extract_strided_slice %15 {offsets = [0, 32], sizes = [8, 32], strides = [1, 1]} : vector<8x96xf32> to vector<8x32xf32>
    %18 = vector.extract_strided_slice %15 {offsets = [0, 64], sizes = [8, 32], strides = [1, 1]} : vector<8x96xf32> to vector<8x32xf32>
    %cst_10 = arith.constant dense<0.000000e+00> : vector<8x8xf32>
    %19 = tpu.matmul %16, %17, %cst_10 {dimension_numbers = #tpu.dot_dimension_numbers<[1], [1], [0], [0], [0, 0, 1, 0], [], []>} : vector<8x32xf32>, vector<8x32xf32>, vector<8x8xf32> -> vector<8x8xf32>
    %cst_11 = arith.constant 0.176776692 : f32
    %20 = vector.broadcast %cst_11 : f32 to vector<8x8xf32>
    %21 = arith.mulf %19, %20 : vector<8x8xf32>
    %c0_12 = arith.constant 0 : index
    %c0_13 = arith.constant 0 : index
    %22 = vector.load %arg1[%c0_12, %c0_13] : memref<8x8xf32, #tpu.memory_space<vmem>>, vector<8x8xf32>
    %23 = arith.addf %21, %22 : vector<8x8xf32>
    %cst_14 = arith.constant dense<0xFF800000> : vector<8xf32>
    %24 = vector.multi_reduction <maximumf>, %23, %cst_14 [1] : vector<8x8xf32> to vector<8xf32>
    %25 = vector.shape_cast %24 : vector<8xf32> to vector<8x1xf32>
    %26 = vector.broadcast %25 : vector<8x1xf32> to vector<8x8xf32>
    %27 = arith.subf %23, %26 : vector<8x8xf32>
    %28 = math.exp %27 : vector<8x8xf32>
    %cst_15 = arith.constant dense<0.000000e+00> : vector<8xf32>
    %29 = vector.multi_reduction <add>, %28, %cst_15 [1] : vector<8x8xf32> to vector<8xf32>
    %30 = vector.shape_cast %29 : vector<8xf32> to vector<8x1xf32>
    %31 = tpu.reciprocal %30 {approx = true} : vector<8x1xf32> -> vector<8x1xf32>
    %32 = vector.broadcast %31 : vector<8x1xf32> to vector<8x8xf32>
    %33 = arith.mulf %28, %32 : vector<8x8xf32>
    %cst_16 = arith.constant dense<0.000000e+00> : vector<8x32xf32>
    %34 = tpu.matmul %33, %18, %cst_16 {dimension_numbers = #tpu.dot_dimension_numbers<[1], [0], [0], [1], [0, 0, 1, 1], [], []>} : vector<8x8xf32>, vector<8x32xf32>, vector<8x32xf32> -> vector<8x32xf32>
    %c0_17 = arith.constant 0 : index
    %c0_18 = arith.constant 0 : index
    %35 = vector.load %arg7[%c0_17, %c0_18] : memref<32x32xf32, #tpu.memory_space<vmem>>, vector<32x32xf32>
    %cst_19 = arith.constant dense<0.000000e+00> : vector<8x32xf32>
    %36 = tpu.matmul %34, %35, %cst_19 {dimension_numbers = #tpu.dot_dimension_numbers<[1], [0], [0], [1], [0, 0, 1, 1], [], []>} : vector<8x32xf32>, vector<32x32xf32>, vector<8x32xf32> -> vector<8x32xf32>
    %c0_20 = arith.constant 0 : index
    %c0_21 = arith.constant 0 : index
    %37 = vector.load %arg8[%c0_20, %c0_21] : memref<1x32xf32, #tpu.memory_space<vmem>>, vector<1x32xf32>
    %38 = vector.broadcast %37 : vector<1x32xf32> to vector<8x32xf32>
    %39 = arith.addf %36, %38 : vector<8x32xf32>
    %40 = arith.addf %10, %39 : vector<8x32xf32>
    %cst_22 = arith.constant dense<0.000000e+00> : vector<8xf32>
    %41 = vector.multi_reduction <add>, %40, %cst_22 [1] : vector<8x32xf32> to vector<8xf32>
    %42 = vector.shape_cast %41 : vector<8xf32> to vector<8x1xf32>
    %cst_23 = arith.constant 3.200000e+01 : f32
    %43 = vector.broadcast %cst_23 : f32 to vector<8x1xf32>
    %44 = arith.divf %42, %43 : vector<8x1xf32>
    %45 = vector.broadcast %44 : vector<8x1xf32> to vector<8x32xf32>
    %46 = arith.subf %40, %45 : vector<8x32xf32>
    %47 = arith.mulf %46, %46 : vector<8x32xf32>
    %cst_24 = arith.constant dense<0.000000e+00> : vector<8xf32>
    %48 = vector.multi_reduction <add>, %47, %cst_24 [1] : vector<8x32xf32> to vector<8xf32>
    %49 = vector.shape_cast %48 : vector<8xf32> to vector<8x1xf32>
    %cst_25 = arith.constant 3.200000e+01 : f32
    %50 = vector.broadcast %cst_25 : f32 to vector<8x1xf32>
    %51 = arith.divf %49, %50 : vector<8x1xf32>
    %52 = vector.broadcast %44 : vector<8x1xf32> to vector<8x32xf32>
    %53 = arith.subf %40, %52 : vector<8x32xf32>
    %cst_26 = arith.constant 9.99999974E-6 : f32
    %54 = vector.broadcast %cst_26 : f32 to vector<8x1xf32>
    %55 = arith.addf %51, %54 : vector<8x1xf32>
    %56 = math.rsqrt %55 : vector<8x1xf32>
    %57 = vector.broadcast %56 : vector<8x1xf32> to vector<8x32xf32>
    %58 = arith.mulf %53, %57 : vector<8x32xf32>
    %c0_27 = arith.constant 0 : index
    %c0_28 = arith.constant 0 : index
    %59 = vector.load %arg9[%c0_27, %c0_28] : memref<1x32xf32, #tpu.memory_space<vmem>>, vector<1x32xf32>
    %60 = vector.broadcast %59 : vector<1x32xf32> to vector<8x32xf32>
    %61 = arith.mulf %58, %60 : vector<8x32xf32>
    %c0_29 = arith.constant 0 : index
    %c0_30 = arith.constant 0 : index
    %62 = vector.load %arg10[%c0_29, %c0_30] : memref<1x32xf32, #tpu.memory_space<vmem>>, vector<1x32xf32>
    %63 = vector.broadcast %62 : vector<1x32xf32> to vector<8x32xf32>
    %64 = arith.addf %61, %63 : vector<8x32xf32>
    %c0_31 = arith.constant 0 : index
    %c0_32 = arith.constant 0 : index
    %65 = vector.load %arg13[%c0_31, %c0_32] : memref<32x128xf32, #tpu.memory_space<vmem>>, vector<32x128xf32>
    %cst_33 = arith.constant dense<0.000000e+00> : vector<8x128xf32>
    %66 = tpu.matmul %64, %65, %cst_33 {dimension_numbers = #tpu.dot_dimension_numbers<[1], [0], [0], [1], [0, 0, 1, 1], [], []>} : vector<8x32xf32>, vector<32x128xf32>, vector<8x128xf32> -> vector<8x128xf32>
    %c0_34 = arith.constant 0 : index
    %c0_35 = arith.constant 0 : index
    %67 = vector.load %arg14[%c0_34, %c0_35] : memref<1x128xf32, #tpu.memory_space<vmem>>, vector<1x128xf32>
    %68 = vector.broadcast %67 : vector<1x128xf32> to vector<8x128xf32>
    %69 = arith.addf %66, %68 : vector<8x128xf32>
    %cst_36 = arith.constant 0.000000e+00 : f32
    %70 = vector.broadcast %cst_36 : f32 to vector<8x128xf32>
    %71 = arith.maximumf %69, %70 : vector<8x128xf32>
    %c0_37 = arith.constant 0 : index
    %c0_38 = arith.constant 0 : index
    %72 = vector.load %arg15[%c0_37, %c0_38] : memref<128x32xf32, #tpu.memory_space<vmem>>, vector<128x32xf32>
    %cst_39 = arith.constant dense<0.000000e+00> : vector<8x32xf32>
    %73 = tpu.matmul %71, %72, %cst_39 {dimension_numbers = #tpu.dot_dimension_numbers<[1], [0], [0], [1], [0, 0, 1, 1], [], []>} : vector<8x128xf32>, vector<128x32xf32>, vector<8x32xf32> -> vector<8x32xf32>
    %c0_40 = arith.constant 0 : index
    %c0_41 = arith.constant 0 : index
    %74 = vector.load %arg16[%c0_40, %c0_41] : memref<1x32xf32, #tpu.memory_space<vmem>>, vector<1x32xf32>
    %75 = vector.broadcast %74 : vector<1x32xf32> to vector<8x32xf32>
    %76 = arith.addf %73, %75 : vector<8x32xf32>
    %77 = arith.addf %64, %76 : vector<8x32xf32>
    %cst_42 = arith.constant dense<0.000000e+00> : vector<8xf32>
    %78 = vector.multi_reduction <add>, %77, %cst_42 [1] : vector<8x32xf32> to vector<8xf32>
    %79 = vector.shape_cast %78 : vector<8xf32> to vector<8x1xf32>
    %cst_43 = arith.constant 3.200000e+01 : f32
    %80 = vector.broadcast %cst_43 : f32 to vector<8x1xf32>
    %81 = arith.divf %79, %80 : vector<8x1xf32>
    %82 = vector.broadcast %81 : vector<8x1xf32> to vector<8x32xf32>
    %83 = arith.subf %77, %82 : vector<8x32xf32>
    %84 = arith.mulf %83, %83 : vector<8x32xf32>
    %cst_44 = arith.constant dense<0.000000e+00> : vector<8xf32>
    %85 = vector.multi_reduction <add>, %84, %cst_44 [1] : vector<8x32xf32> to vector<8xf32>
    %86 = vector.shape_cast %85 : vector<8xf32> to vector<8x1xf32>
    %cst_45 = arith.constant 3.200000e+01 : f32
    %87 = vector.broadcast %cst_45 : f32 to vector<8x1xf32>
    %88 = arith.divf %86, %87 : vector<8x1xf32>
    %89 = vector.broadcast %81 : vector<8x1xf32> to vector<8x32xf32>
    %90 = arith.subf %77, %89 : vector<8x32xf32>
    %cst_46 = arith.constant 9.99999974E-6 : f32
    %91 = vector.broadcast %cst_46 : f32 to vector<8x1xf32>
    %92 = arith.addf %88, %91 : vector<8x1xf32>
    %93 = math.rsqrt %92 : vector<8x1xf32>
    %94 = vector.broadcast %93 : vector<8x1xf32> to vector<8x32xf32>
    %95 = arith.mulf %90, %94 : vector<8x32xf32>
    %c0_47 = arith.constant 0 : index
    %c0_48 = arith.constant 0 : index
    %96 = vector.load %arg11[%c0_47, %c0_48] : memref<1x32xf32, #tpu.memory_space<vmem>>, vector<1x32xf32>
    %97 = vector.broadcast %96 : vector<1x32xf32> to vector<8x32xf32>
    %98 = arith.mulf %95, %97 : vector<8x32xf32>
    %c0_49 = arith.constant 0 : index
    %c0_50 = arith.constant 0 : index
    %99 = vector.load %arg12[%c0_49, %c0_50] : memref<1x32xf32, #tpu.memory_space<vmem>>, vector<1x32xf32>
    %100 = vector.broadcast %99 : vector<1x32xf32> to vector<8x32xf32>
    %101 = arith.addf %98, %100 : vector<8x32xf32>
    %c0_51 = arith.constant 0 : index
    %c0_52 = arith.constant 0 : index
    %102 = vector.load %arg2[%c0_51, %c0_52] : memref<2x8xf32, #tpu.memory_space<vmem>>, vector<2x8xf32>
    %cst_53 = arith.constant dense<0.000000e+00> : vector<2x32xf32>
    %103 = tpu.matmul %102, %101, %cst_53 {dimension_numbers = #tpu.dot_dimension_numbers<[1], [0], [0], [1], [0, 0, 1, 1], [], []>} : vector<2x8xf32>, vector<8x32xf32>, vector<2x32xf32> -> vector<2x32xf32>
    %c0_54 = arith.constant 0 : index
    %c0_55 = arith.constant 0 : index
    %104 = vector.load %arg17[%c0_54, %c0_55] : memref<32x64xf32, #tpu.memory_space<vmem>>, vector<32x64xf32>
    %cst_56 = arith.constant dense<0.000000e+00> : vector<2x64xf32>
    %105 = tpu.matmul %103, %104, %cst_56 {dimension_numbers = #tpu.dot_dimension_numbers<[1], [0], [0], [1], [0, 0, 1, 1], [], []>} : vector<2x32xf32>, vector<32x64xf32>, vector<2x64xf32> -> vector<2x64xf32>
    %c0_57 = arith.constant 0 : index
    %c0_58 = arith.constant 0 : index
    %106 = vector.load %arg18[%c0_57, %c0_58] : memref<1x64xf32, #tpu.memory_space<vmem>>, vector<1x64xf32>
    %107 = vector.broadcast %106 : vector<1x64xf32> to vector<2x64xf32>
    %108 = arith.addf %105, %107 : vector<2x64xf32>
    %cst_59 = arith.constant 0.000000e+00 : f32
    %109 = vector.broadcast %cst_59 : f32 to vector<2x64xf32>
    %110 = arith.maximumf %108, %109 : vector<2x64xf32>
    %c0_60 = arith.constant 0 : index
    %c0_61 = arith.constant 0 : index
    %111 = vector.load %arg19[%c0_60, %c0_61] : memref<64x1xf32, #tpu.memory_space<vmem>>, vector<64x1xf32>
    %cst_62 = arith.constant dense<0.000000e+00> : vector<2x1xf32>
    %112 = tpu.matmul %110, %111, %cst_62 {dimension_numbers = #tpu.dot_dimension_numbers<[1], [0], [0], [1], [0, 0, 1, 1], [], []>} : vector<2x64xf32>, vector<64x1xf32>, vector<2x1xf32> -> vector<2x1xf32>
    %c0_63 = arith.constant 0 : index
    %c0_64 = arith.constant 0 : index
    %113 = vector.load %arg20[%c0_63, %c0_64] : memref<1x1xf32, #tpu.memory_space<vmem>>, vector<1x1xf32>
    %114 = vector.broadcast %113 : vector<1x1xf32> to vector<2x1xf32>
    %115 = arith.addf %112, %114 : vector<2x1xf32>
    %c0_65 = arith.constant 0 : index
    %c0_66 = arith.constant 0 : index
    %116 = vector.load %arg21[%c0_65, %c0_66] : memref<2x1xf32, #tpu.memory_space<vmem>>, vector<2x1xf32>
    tpu.vector_store %arg21[%c0_65, %c0_66], %115 {strides = array<i32>} : memref<2x1xf32, #tpu.memory_space<vmem>>, vector<2x1xf32>,
    return
  }
}

</mosaic_0001>

<llo_original>
// kernel: attention_classifier_pallas.1
$region0: #{attention_classifier_pallas.1}
  #allocation0 [shape = 'u32[]', space=smem, size = 0x4, offset = 0x4, fixed_abs, tag = 'smem constant byte address 0x4 - core index']
  #allocation1 [shape = 'u32[72,128]{1,0:T(1,128)}', space=vmem, size = 0x9000, scoped, tag = 'internal scratch']
  #allocation2 [shape = 'f32[1,1]{1,0:T(1,128)S(1)}', space=vmem, size = 0x200, scoped, tag = 'scoped memory for attention_classifier_pallas.1']
  %s0 = inlined_call_operand.vmem [shape: f32[2,32], index: 0, kind: input, shape index: {}]
  %s1 = inlined_call_operand.vmem [shape: f32[8,8], index: 1, kind: input, shape index: {}]
  %s2 = inlined_call_operand.vmem [shape: f32[2,8], index: 2, kind: input, shape index: {}]
  %s3 = inlined_call_operand.vmem [shape: f32[32,128], index: 3, kind: input, shape index: {}]
  %s4 = inlined_call_operand.vmem [shape: f32[1,128], index: 4, kind: input, shape index: {}]
  %s5 = inlined_call_operand.vmem [shape: f32[32,96], index: 5, kind: input, shape index: {}]
  %s6 = inlined_call_operand.vmem [shape: f32[1,96], index: 6, kind: input, shape index: {}]
  %s7 = inlined_call_operand.vmem [shape: f32[32,32], index: 7, kind: input, shape index: {}]
  %s8 = inlined_call_operand.vmem [shape: f32[1,32], index: 8, kind: input, shape index: {}]
  %s9 = inlined_call_operand.vmem [shape: f32[1,32], index: 9, kind: input, shape index: {}]
  %s10 = inlined_call_operand.vmem [shape: f32[1,32], index: 10, kind: input, shape index: {}]
  %s11 = inlined_call_operand.vmem [shape: f32[1,32], index: 11, kind: input, shape index: {}]
  %s12 = inlined_call_operand.vmem [shape: f32[1,32], index: 12, kind: input, shape index: {}]
  %s13 = inlined_call_operand.vmem [shape: f32[32,128], index: 13, kind: input, shape index: {}]
  %s14 = inlined_call_operand.vmem [shape: f32[1,128], index: 14, kind: input, shape index: {}]
  %s15 = inlined_call_operand.vmem [shape: f32[128,32], index: 15, kind: input, shape index: {}]
  %s16 = inlined_call_operand.vmem [shape: f32[1,32], index: 16, kind: input, shape index: {}]
  %s17 = inlined_call_operand.vmem [shape: f32[32,64], index: 17, kind: input, shape index: {}]
  %s18 = inlined_call_operand.vmem [shape: f32[1,64], index: 18, kind: input, shape index: {}]
  %s19 = inlined_call_operand.vmem [shape: f32[64,1], index: 19, kind: input, shape index: {}]
  %s20 = inlined_call_operand.<no memory space> [shape: f32[1,1], index: 20, kind: input, shape index: {}]
  %s21 = inlined_call_operand.vmem [shape: f32[2,1], index: 21, kind: output, shape index: {}]
  %s22 = sld [smem:[#allocation0]]
  $region94: #{attention_classifier_pallas.1} parent=0
    _
  %s24 = ssub.s32 1, %s22
  %s25 = scalar_select 0, %s24, %s22
  %v26 = vstv %s20
  %27 = vst [vmem:[#allocation2] sm:$0x1] %v26
  // Predicated region
  $region2: #{attention_classifier_pallas.1} parent=0 // pred_check
    _
  $region3: #{attention_classifier_pallas.1} parent=0 // pred_check_branch
    %29 = sbr.rel (0) target = $region5
  $region4: #{attention_classifier_pallas.1} parent=0 // pred_region
    _
  $region5: #{attention_classifier_pallas.1} parent=0 // pred_fallthru
    _
  // Predicated region
  $region6: #{attention_classifier_pallas.1} parent=0 // pred_check
    _
  $region7: #{attention_classifier_pallas.1} parent=0 // pred_check_branch
    %31 = sbr.rel (0) target = $region9
  $region8: #{attention_classifier_pallas.1} parent=0 // pred_region
    _
  $region9: #{attention_classifier_pallas.1} parent=0 // pred_fallthru
    _
  // Predicated region
  $region10: #{attention_classifier_pallas.1} parent=0 // pred_check
    _
  $region11: #{attention_classifier_pallas.1} parent=0 // pred_check_branch
    %33 = sbr.rel (0) target = $region13
  $region12: #{attention_classifier_pallas.1} parent=0 // pred_region
    _
  $region13: #{attention_classifier_pallas.1} parent=0 // pred_fallthru
    _
  // Predicated region
  $region14: #{attention_classifier_pallas.1} parent=0 // pred_check
    _
  $region15: #{attention_classifier_pallas.1} parent=0 // pred_check_branch
    %35 = sbr.rel (0) target = $region17
  $region16: #{attention_classifier_pallas.1} parent=0 // pred_region
    _
  $region17: #{attention_classifier_pallas.1} parent=0 // pred_fallthru
    _
  // Predicated region
  $region18: #{attention_classifier_pallas.1} parent=0 // pred_check
    _
  $region19: #{attention_classifier_pallas.1} parent=0 // pred_check_branch
    %37 = sbr.rel (0) target = $region21
  $region20: #{attention_classifier_pallas.1} parent=0 // pred_region
    _
  $region21: #{attention_classifier_pallas.1} parent=0 // pred_fallthru
    _
  // Predicated region
  $region22: #{attention_classifier_pallas.1} parent=0 // pred_check
    _
  $region23: #{attention_classifier_pallas.1} parent=0 // pred_check_branch
    %39 = sbr.rel (0) target = $region25
  $region24: #{attention_classifier_pallas.1} parent=0 // pred_region
    _
  $region25: #{attention_classifier_pallas.1} parent=0 // pred_fallthru
    _
  // Predicated region
  $region26: #{attention_classifier_pallas.1} parent=0 // pred_check
    _
  $region27: #{attention_classifier_pallas.1} parent=0 // pred_check_branch
    %41 = sbr.rel (0) target = $region29
  $region28: #{attention_classifier_pallas.1} parent=0 // pred_region
    _
  $region29: #{attention_classifier_pallas.1} parent=0 // pred_fallthru
    _
  // Predicated region
  $region30: #{attention_classifier_pallas.1} parent=0 // pred_check
    _
  $region31: #{attention_classifier_pallas.1} parent=0 // pred_check_branch
    %43 = sbr.rel (0) target = $region33
  $region32: #{attention_classifier_pallas.1} parent=0 // pred_region
    _
  $region33: #{attention_classifier_pallas.1} parent=0 // pred_fallthru
    _
  // Predicated region
  $region34: #{attention_classifier_pallas.1} parent=0 // pred_check
    _
  $region35: #{attention_classifier_pallas.1} parent=0 // pred_check_branch
    %45 = sbr.rel (0) target = $region37
  $region36: #{attention_classifier_pallas.1} parent=0 // pred_region
    _
  $region37: #{attention_classifier_pallas.1} parent=0 // pred_fallthru
    _
  // Predicated region
  $region38: #{attention_classifier_pallas.1} parent=0 // pred_check
    _
  $region39: #{attention_classifier_pallas.1} parent=0 // pred_check_branch
    %47 = sbr.rel (0) target = $region41
  $region40: #{attention_classifier_pallas.1} parent=0 // pred_region
    _
  $region41: #{attention_classifier_pallas.1} parent=0 // pred_fallthru
    _
  // Predicated region
  $region42: #{attention_classifier_pallas.1} parent=0 // pred_check
    _
  $region43: #{attention_classifier_pallas.1} parent=0 // pred_check_branch
    %49 = sbr.rel (0) target = $region45
  $region44: #{attention_classifier_pallas.1} parent=0 // pred_region
    _
  $region45: #{attention_classifier_pallas.1} parent=0 // pred_fallthru
    _
  // Predicated region
  $region46: #{attention_classifier_pallas.1} parent=0 // pred_check
    _
  $region47: #{attention_classifier_pallas.1} parent=0 // pred_check_branch
    %51 = sbr.rel (0) target = $region49
  $region48: #{attention_classifier_pallas.1} parent=0 // pred_region
    _
  $region49: #{attention_classifier_pallas.1} parent=0 // pred_fallthru
    _
  // Predicated region
  $region50: #{attention_classifier_pallas.1} parent=0 // pred_check
    _
  $region51: #{attention_classifier_pallas.1} parent=0 // pred_check_branch
    %53 = sbr.rel (0) target = $region53
  $region52: #{attention_classifier_pallas.1} parent=0 // pred_region
    _
  $region53: #{attention_classifier_pallas.1} parent=0 // pred_fallthru
    _
  // Predicated region
  $region54: #{attention_classifier_pallas.1} parent=0 // pred_check
    _
  $region55: #{attention_classifier_pallas.1} parent=0 // pred_check_branch
    %55 = sbr.rel (0) target = $region57
  $region56: #{attention_classifier_pallas.1} parent=0 // pred_region
    _
  $region57: #{attention_classifier_pallas.1} parent=0 // pred_fallthru
    _
  // Predicated region
  $region58: #{attention_classifier_pallas.1} parent=0 // pred_check
    _
  $region59: #{attention_classifier_pallas.1} parent=0 // pred_check_branch
    %57 = sbr.rel (0) target = $region61
  $region60: #{attention_classifier_pallas.1} parent=0 // pred_region
    _
  $region61: #{attention_classifier_pallas.1} parent=0 // pred_fallthru
    _
  // Predicated region
  $region62: #{attention_classifier_pallas.1} parent=0 // pred_check
    _
  $region63: #{attention_classifier_pallas.1} parent=0 // pred_check_branch
    %59 = sbr.rel (0) target = $region65
  $region64: #{attention_classifier_pallas.1} parent=0 // pred_region
    _
  $region65: #{attention_classifier_pallas.1} parent=0 // pred_fallthru
    _
  // Predicated region
  $region66: #{attention_classifier_pallas.1} parent=0 // pred_check
    _
  $region67: #{attention_classifier_pallas.1} parent=0 // pred_check_branch
    %61 = sbr.rel (0) target = $region69
  $region68: #{attention_classifier_pallas.1} parent=0 // pred_region
    _
  $region69: #{attention_classifier_pallas.1} parent=0 // pred_fallthru
    _
  // Predicated region
  $region70: #{attention_classifier_pallas.1} parent=0 // pred_check
    _
  $region71: #{attention_classifier_pallas.1} parent=0 // pred_check_branch
    %63 = sbr.rel (0) target = $region73
  $region72: #{attention_classifier_pallas.1} parent=0 // pred_region
    _
  $region73: #{attention_classifier_pallas.1} parent=0 // pred_fallthru
    _
  // Predicated region
  $region74: #{attention_classifier_pallas.1} parent=0 // pred_check
    _
  $region75: #{attention_classifier_pallas.1} parent=0 // pred_check_branch
    %65 = sbr.rel (0) target = $region77
  $region76: #{attention_classifier_pallas.1} parent=0 // pred_region
    _
  $region77: #{attention_classifier_pallas.1} parent=0 // pred_fallthru
    _
  // Predicated region
  $region78: #{attention_classifier_pallas.1} parent=0 // pred_check
    _
  $region79: #{attention_classifier_pallas.1} parent=0 // pred_check_branch
    %67 = sbr.rel (0) target = $region81
  $region80: #{attention_classifier_pallas.1} parent=0 // pred_region
    _
  $region81: #{attention_classifier_pallas.1} parent=0 // pred_fallthru
    _
  // Predicated region
  $region82: #{attention_classifier_pallas.1} parent=0 // pred_check
    _
  $region83: #{attention_classifier_pallas.1} parent=0 // pred_check_branch
    %69 = sbr.rel (0) target = $region85
  $region84: #{attention_classifier_pallas.1} parent=0 // pred_region
    _
  $region85: #{attention_classifier_pallas.1} parent=0 // pred_fallthru
    _
  %v70 = vld [vmem:[%s0] sm:$0x3]
  %v71 = vld [vmem:[%s3] sm:$0xff]
  %v72 = vld [vmem:[%s3 + $0x8] sm:$0xff]
  %v73 = vld [vmem:[%s3 + $0x10] sm:$0xff]
  %v74 = vld [vmem:[%s3 + $0x18] sm:$0xff]
  %v75 = vld [vmem:[%s4] sm:$0x1]
  %v77 = vperm.slane %v75, 0
  %vm79 = vcmask 261120
  %v81 = vsel %vm79, %v70, 0
  %83 = vmatpush.msra.mxu0 0.0
  %84 = vmatpush.msra.mxu0 0.0
  %85 = vmatpush.msra.mxu0 0.0
  %86 = vmatpush.msra.mxu0 0.0
  %87 = vmatpush.msra.mxu0 0.0
  %88 = vmatpush.msra.mxu0 0.0
  %89 = vmatpush.msra.mxu0 0.0
  %90 = vmatpush.msra.mxu0 0.0
  %91 = vmatpush.msra.mxu0 0.0
  %92 = vmatpush.msra.mxu0 0.0
  %93 = vmatpush.msra.mxu0 0.0
  %94 = vmatpush.msra.mxu0 0.0
  %95 = vmatpush.msra.mxu0 %v74
  %96 = vmatpush.msra.mxu0 %v73
  %97 = vmatpush.msra.mxu0 %v72
  %98 = vmatpush.msra.mxu0 %v71
  %99 = vmatmul.f32.gmra.mxu0 %v81
  %v100 = vpop.f32.mrf.mxu0
  %v101 = vadd.f32 %v77, %v100
  %102 = vdwg.mxu0
  %v104 = vrot.slane %v101, 6
  %105 = vrot.lane.b32.xlu0 %v104, 96
  %v106 = vpop.permute.xlu0 %105
  %v108 = vrot.slane %v101, 4
  %109 = vrot.lane.b32.xlu0 %v108, 64
  %v110 = vpop.permute.xlu0 %109
  %v112 = vrot.slane %v101, 2
  %113 = vrot.lane.b32.xlu0 %v112, 32
  %v114 = vpop.permute.xlu0 %113
  %vm116 = vcmask 1041408
  %v117 = vsel %vm116, %v101, %v106
  %vm118 = vcmask 1043456
  %v119 = vsel %vm118, %v117, %v110
  %vm120 = vcmask 1045504
  %v121 = vsel %vm120, %v119, %v114
  %v122 = vld [vmem:[%s5] sm:$0xff]
  %v123 = vld [vmem:[%s5 + $0x8] sm:$0xff]
  %v124 = vld [vmem:[%s5 + $0x10] sm:$0xff]
  %v125 = vld [vmem:[%s5 + $0x18] sm:$0xff]
  %v126 = vld [vmem:[%s6] sm:$0x1]
  %v128 = vperm.slane %v126, 0
  %v131 = vsel %vm79, %v121, 0
  %133 = vmatpush.msra.mxu0 0.0
  %134 = vmatpush.msra.mxu0 0.0
  %135 = vmatpush.msra.mxu0 0.0
  %136 = vmatpush.msra.mxu0 0.0
  %137 = vmatpush.msra.mxu0 0.0
  %138 = vmatpush.msra.mxu0 0.0
  %139 = vmatpush.msra.mxu0 0.0
  %140 = vmatpush.msra.mxu0 0.0
  %141 = vmatpush.msra.mxu0 0.0
  %142 = vmatpush.msra.mxu0 0.0
  %143 = vmatpush.msra.mxu0 0.0
  %144 = vmatpush.msra.mxu0 0.0
  %145 = vmatpush.msra.mxu0 %v125
  %146 = vmatpush.msra.mxu0 %v124
  %147 = vmatpush.msra.mxu0 %v123
  %148 = vmatpush.msra.mxu0 %v122
  %149 = vmatmul.f32.gmra.mxu0 %v131
  %v150 = vpop.f32.mrf.mxu0
  %v151 = vadd.f32 %v128, %v150
  %152 = vdwg.mxu0
  %154 = vrot.lane.b32.xlu0 %v151, 96
  %v155 = vpop.permute.xlu0 %154
  %v156 = vsel %vm79, %v151, 0
  %v158 = vsel %vm79, %v155, 0
  %160 = vmatpush.xpose.msra.mxu0 0.0
  %161 = vmatpush.xpose.msra.mxu0 0.0
  %162 = vmatpush.xpose.msra.mxu0 0.0
  %163 = vmatpush.xpose.msra.mxu0 0.0
  %164 = vmatpush.xpose.msra.mxu0 0.0
  %165 = vmatpush.xpose.msra.mxu0 0.0
  %166 = vmatpush.xpose.msra.mxu0 0.0
  %167 = vmatpush.xpose.msra.mxu0 0.0
  %168 = vmatpush.xpose.msra.mxu0 0.0
  %169 = vmatpush.xpose.msra.mxu0 0.0
  %170 = vmatpush.xpose.msra.mxu0 0.0
  %171 = vmatpush.xpose.msra.mxu0 0.0
  %172 = vmatpush.xpose.msra.mxu0 0.0
  %173 = vmatpush.xpose.msra.mxu0 0.0
  %174 = vmatpush.xpose.msra.mxu0 0.0
  %175 = vmatpush.xpose.msra.mxu0 %v158
  %176 = vmatmul.f32.gmra.mxu0 %v156
  %v177 = vpop.f32.mrf.mxu0
  %v178 = vadd.f32 0.0, %v177
  %179 = vdwg.mxu0
  %v180 = vmul.f32 %v178, 0.17677669
  %v181 = vld [vmem:[%s1] sm:$0xff]
  %v182 = vadd.f32 %v180, %v181
  %vm183 = vcmask 64512
  %v184 = vsel %vm183, %v182, -inf
  %185 = vmax.xlane.f32.xlu0 %v184
  %v186 = vpop.xlane.xlu0 %185
  %v187 = vsub.f32 %v182, %v186
  %v188 = vmul.f32 %v187, 1.442695
  %v189 = vpow.pop %v188
  %v190 = vsel %vm183, %v189, 0.0
  %191 = vadd.xlane.f32.xlu0 %v190
  %v192 = vpop.xlane.xlu0 %191
  %v193 = vrcp.pop %v192
  %v194 = vmul.f32 %v189, %v193
  %195 = vrot.lane.b32.xlu0 %v151, 64
  %v196 = vpop.permute.xlu0 %195
  %v199 = vsel %vm183, %v194, 0
  %201 = vmatpush.msra.mxu0 0.0
  %202 = vmatpush.msra.mxu0 0.0
  %203 = vmatpush.msra.mxu0 0.0
  %204 = vmatpush.msra.mxu0 0.0
  %205 = vmatpush.msra.mxu0 0.0
  %206 = vmatpush.msra.mxu0 0.0
  %207 = vmatpush.msra.mxu0 0.0
  %208 = vmatpush.msra.mxu0 0.0
  %209 = vmatpush.msra.mxu0 0.0
  %210 = vmatpush.msra.mxu0 0.0
  %211 = vmatpush.msra.mxu0 0.0
  %212 = vmatpush.msra.mxu0 0.0
  %213 = vmatpush.msra.mxu0 0.0
  %214 = vmatpush.msra.mxu0 0.0
  %215 = vmatpush.msra.mxu0 0.0
  %216 = vmatpush.msra.mxu0 %v196
  %217 = vmatmul.f32.gmra.mxu0 %v199
  %v218 = vpop.f32.mrf.mxu0
  %v219 = vadd.f32 0.0, %v218
  %220 = vdwg.mxu0
  %v221 = vld [vmem:[%s7] sm:$0xff]
  %v222 = vld [vmem:[%s7 + $0x8] sm:$0xff]
  %v223 = vld [vmem:[%s7 + $0x10] sm:$0xff]
  %v224 = vld [vmem:[%s7 + $0x18] sm:$0xff]
  %v225 = vld [vmem:[%s8] sm:$0x1]
  %v227 = vperm.slane %v225, 0
  %v230 = vsel %vm79, %v219, 0
  %232 = vmatpush.msra.mxu0 0.0
  %233 = vmatpush.msra.mxu0 0.0
  %234 = vmatpush.msra.mxu0 0.0
  %235 = vmatpush.msra.mxu0 0.0
  %236 = vmatpush.msra.mxu0 0.0
  %237 = vmatpush.msra.mxu0 0.0
  %238 = vmatpush.msra.mxu0 0.0
  %239 = vmatpush.msra.mxu0 0.0
  %240 = vmatpush.msra.mxu0 0.0
  %241 = vmatpush.msra.mxu0 0.0
  %242 = vmatpush.msra.mxu0 0.0
  %243 = vmatpush.msra.mxu0 0.0
  %244 = vmatpush.msra.mxu0 %v224
  %245 = vmatpush.msra.mxu0 %v223
  %246 = vmatpush.msra.mxu0 %v222
  %247 = vmatpush.msra.mxu0 %v221
  %248 = vmatmul.f32.gmra.mxu0 %v230
  %v249 = vpop.f32.mrf.mxu0
  %v250 = vadd.f32 %v227, %v249
  %251 = vdwg.mxu0
  %v252 = vadd.f32 %v121, %v250
  %v253 = vsel %vm79, %v252, 0.0
  %254 = vadd.xlane.f32.xlu0 %v253
  %v255 = vpop.xlane.xlu0 %254
  %v256 = vrcp.pop 32.0
  %v257 = vmul.f32 32.0, %v256
  %v258 = vsub.f32 1.0, %v257
  %v259 = vmul.f32 %v256, %v258
  %v260 = vadd.f32 %v256, %v259
  %vm261 = vweird.f32 %v256
  %v262 = vsel %vm261, %v256, %v260
  %v263 = vmul.f32 %v255, %v262
  %v264 = vsub.f32 %v252, %v263
  %v265 = vmul.f32 %v264, %v264
  %v266 = vsel %vm79, %v265, 0.0
  %267 = vadd.xlane.f32.xlu0 %v266
  %v268 = vpop.xlane.xlu0 %267
  %v269 = vmul.f32 %v268, %v262
  %v270 = vadd.f32 %v269, 1e-05
  %v271 = vrsqrt.pop %v270
  %v272 = vmul.f32 %v271, %v270
  %v273 = vmul.f32 %v272, %v271
  %v274 = vmul.f32 0.5, %v273
  %v275 = vsub.f32 1.5, %v274
  %v276 = vmul.f32 %v271, %v275
  %vm277 = vweird.f32 %v270
  %vm278 = vweird.f32 %v271
  %vm279 = vmor %vm277, %vm278
  %v280 = vsel %vm279, %v271, %v276
  %v281 = vmul.f32 %v264, %v280
  %v282 = vld [vmem:[%s9] sm:$0x1]
  %v284 = vperm.slane %v282, 0
  %v286 = vmul.f32 %v281, %v284
  %v287 = vld [vmem:[%s10] sm:$0x1]
  %v289 = vperm.slane %v287, 0
  %v291 = vadd.f32 %v286, %v289
  %v292 = vld [vmem:[%s13] sm:$0xff]
  %v293 = vld [vmem:[%s13 + $0x8] sm:$0xff]
  %v294 = vld [vmem:[%s13 + $0x10] sm:$0xff]
  %v295 = vld [vmem:[%s13 + $0x18] sm:$0xff]
  %v296 = vld [vmem:[%s14] sm:$0x1]
  %v298 = vperm.slane %v296, 0
  %v301 = vsel %vm79, %v291, 0
  %303 = vmatpush.msra.mxu0 0.0
  %304 = vmatpush.msra.mxu0 0.0
  %305 = vmatpush.msra.mxu0 0.0
  %306 = vmatpush.msra.mxu0 0.0
  %307 = vmatpush.msra.mxu0 0.0
  %308 = vmatpush.msra.mxu0 0.0
  %309 = vmatpush.msra.mxu0 0.0
  %310 = vmatpush.msra.mxu0 0.0
  %311 = vmatpush.msra.mxu0 0.0
  %312 = vmatpush.msra.mxu0 0.0
  %313 = vmatpush.msra.mxu0 0.0
  %314 = vmatpush.msra.mxu0 0.0
  %315 = vmatpush.msra.mxu0 %v295
  %316 = vmatpush.msra.mxu0 %v294
  %317 = vmatpush.msra.mxu0 %v293
  %318 = vmatpush.msra.mxu0 %v292
  %319 = vmatmul.f32.gmra.mxu0 %v301
  %v320 = vpop.f32.mrf.mxu0
  %v321 = vadd.f32 %v298, %v320
  %322 = vdwg.mxu0
  %v323 = vmax.f32 %v321, 0.0
  %v324 = vld [vmem:[%s15] sm:$0xff]
  %v325 = vld [vmem:[%s15 + $0x8] sm:$0xff]
  %v326 = vld [vmem:[%s15 + $0x10] sm:$0xff]
  %v327 = vld [vmem:[%s15 + $0x18] sm:$0xff]
  %v328 = vld [vmem:[%s15 + $0x20] sm:$0xff]
  %v329 = vld [vmem:[%s15 + $0x28] sm:$0xff]
  %v330 = vld [vmem:[%s15 + $0x30] sm:$0xff]
  %v331 = vld [vmem:[%s15 + $0x38] sm:$0xff]
  %v332 = vld [vmem:[%s15 + $0x40] sm:$0xff]
  %v333 = vld [vmem:[%s15 + $0x48] sm:$0xff]
  %v334 = vld [vmem:[%s15 + $0x50] sm:$0xff]
  %v335 = vld [vmem:[%s15 + $0x58] sm:$0xff]
  %v336 = vld [vmem:[%s15 + $0x60] sm:$0xff]
  %v337 = vld [vmem:[%s15 + $0x68] sm:$0xff]
  %v338 = vld [vmem:[%s15 + $0x70] sm:$0xff]
  %v339 = vld [vmem:[%s15 + $0x78] sm:$0xff]
  %v340 = vld [vmem:[%s16] sm:$0x1]
  %v342 = vperm.slane %v340, 0
  %344 = vmatpush.msra.mxu0 %v339
  %345 = vmatpush.msra.mxu0 %v338
  %346 = vmatpush.msra.mxu0 %v337
  %347 = vmatpush.msra.mxu0 %v336
  %348 = vmatpush.msra.mxu0 %v335
  %349 = vmatpush.msra.mxu0 %v334
  %350 = vmatpush.msra.mxu0 %v333
  %351 = vmatpush.msra.mxu0 %v332
  %352 = vmatpush.msra.mxu0 %v331
  %353 = vmatpush.msra.mxu0 %v330
  %354 = vmatpush.msra.mxu0 %v329
  %355 = vmatpush.msra.mxu0 %v328
  %356 = vmatpush.msra.mxu0 %v327
  %357 = vmatpush.msra.mxu0 %v326
  %358 = vmatpush.msra.mxu0 %v325
  %359 = vmatpush.msra.mxu0 %v324
  %360 = vmatmul.f32.gmra.mxu0 %v323
  %v361 = vpop.f32.mrf.mxu0
  %v362 = vadd.f32 %v342, %v361
  %363 = vdwg.mxu0
  %v364 = vadd.f32 %v291, %v362
  %v365 = vsel %vm79, %v364, 0.0
  %366 = vadd.xlane.f32.xlu0 %v365
  %v367 = vpop.xlane.xlu0 %366
  %v368 = vmul.f32 %v367, %v262
  %v369 = vsub.f32 %v364, %v368
  %v370 = vmul.f32 %v369, %v369
  %v371 = vsel %vm79, %v370, 0.0
  %372 = vadd.xlane.f32.xlu0 %v371
  %v373 = vpop.xlane.xlu0 %372
  %v374 = vmul.f32 %v373, %v262
  %v375 = vadd.f32 %v374, 1e-05
  %v376 = vrsqrt.pop %v375
  %v377 = vmul.f32 %v376, %v375
  %v378 = vmul.f32 %v377, %v376
  %v379 = vmul.f32 0.5, %v378
  %v380 = vsub.f32 1.5, %v379
  %v381 = vmul.f32 %v376, %v380
  %vm382 = vweird.f32 %v375
  %vm383 = vweird.f32 %v376
  %vm384 = vmor %vm382, %vm383
  %v385 = vsel %vm384, %v376, %v381
  %v386 = vmul.f32 %v369, %v385
  %v387 = vld [vmem:[%s11] sm:$0x1]
  %v389 = vperm.slane %v387, 0
  %v391 = vmul.f32 %v386, %v389
  %v392 = vld [vmem:[%s12] sm:$0x1]
  %v394 = vperm.slane %v392, 0
  %v396 = vadd.f32 %v391, %v394
  %v397 = vld [vmem:[%s2] sm:$0x3]
  %v399 = vsel %vm183, %v397, 0
  %401 = vmatpush.msra.mxu0 0.0
  %402 = vmatpush.msra.mxu0 0.0
  %403 = vmatpush.msra.mxu0 0.0
  %404 = vmatpush.msra.mxu0 0.0
  %405 = vmatpush.msra.mxu0 0.0
  %406 = vmatpush.msra.mxu0 0.0
  %407 = vmatpush.msra.mxu0 0.0
  %408 = vmatpush.msra.mxu0 0.0
  %409 = vmatpush.msra.mxu0 0.0
  %410 = vmatpush.msra.mxu0 0.0
  %411 = vmatpush.msra.mxu0 0.0
  %412 = vmatpush.msra.mxu0 0.0
  %413 = vmatpush.msra.mxu0 0.0
  %414 = vmatpush.msra.mxu0 0.0
  %415 = vmatpush.msra.mxu0 0.0
  %416 = vmatpush.msra.mxu0 %v396
  %417 = vmatmul.f32.gmra.mxu0 %v399
  %v418 = vpop.f32.mrf.mxu0
  %v419 = vadd.f32 0.0, %v418
  %420 = vdwg.mxu0
  %v421 = vld [vmem:[%s17] sm:$0xff]
  %v422 = vld [vmem:[%s17 + $0x8] sm:$0xff]
  %v423 = vld [vmem:[%s17 + $0x10] sm:$0xff]
  %v424 = vld [vmem:[%s17 + $0x18] sm:$0xff]
  %v425 = vld [vmem:[%s18] sm:$0x1]
  %v427 = vperm.slane %v425, 0
  %v430 = vsel %vm79, %v419, 0
  %432 = vmatpush.msra.mxu0 0.0
  %433 = vmatpush.msra.mxu0 0.0
  %434 = vmatpush.msra.mxu0 0.0
  %435 = vmatpush.msra.mxu0 0.0
  %436 = vmatpush.msra.mxu0 0.0
  %437 = vmatpush.msra.mxu0 0.0
  %438 = vmatpush.msra.mxu0 0.0
  %439 = vmatpush.msra.mxu0 0.0
  %440 = vmatpush.msra.mxu0 0.0
  %441 = vmatpush.msra.mxu0 0.0
  %442 = vmatpush.msra.mxu0 0.0
  %443 = vmatpush.msra.mxu0 0.0
  %444 = vmatpush.msra.mxu0 %v424
  %445 = vmatpush.msra.mxu0 %v423
  %446 = vmatpush.msra.mxu0 %v422
  %447 = vmatpush.msra.mxu0 %v421
  %448 = vmatmul.f32.gmra.mxu0 %v430
  %v449 = vpop.f32.mrf.mxu0
  %v450 = vadd.f32 %v427, %v449
  %451 = vdwg.mxu0
  %v452 = vmax.f32 %v450, 0.0
  %v453 = vld [vmem:[%s19] sm:$0xff]
  %v454 = vld [vmem:[%s19 + $0x8] sm:$0xff]
  %v455 = vld [vmem:[%s19 + $0x10] sm:$0xff]
  %v456 = vld [vmem:[%s19 + $0x18] sm:$0xff]
  %v457 = vld [vmem:[%s19 + $0x20] sm:$0xff]
  %v458 = vld [vmem:[%s19 + $0x28] sm:$0xff]
  %v459 = vld [vmem:[%s19 + $0x30] sm:$0xff]
  %v460 = vld [vmem:[%s19 + $0x38] sm:$0xff]
  %v461 = vld [vmem:[#allocation2] sm:$0x1]
  %v463 = vperm.slane %v461, 0
  %vm465 = vcmask 523264
  %v467 = vsel %vm465, %v452, 0
  %469 = vmatpush.msra.mxu0 0.0
  %470 = vmatpush.msra.mxu0 0.0
  %471 = vmatpush.msra.mxu0 0.0
  %472 = vmatpush.msra.mxu0 0.0
  %473 = vmatpush.msra.mxu0 0.0
  %474 = vmatpush.msra.mxu0 0.0
  %475 = vmatpush.msra.mxu0 0.0
  %476 = vmatpush.msra.mxu0 0.0
  %477 = vmatpush.msra.mxu0 %v460
  %478 = vmatpush.msra.mxu0 %v459
  %479 = vmatpush.msra.mxu0 %v458
  %480 = vmatpush.msra.mxu0 %v457
  %481 = vmatpush.msra.mxu0 %v456
  %482 = vmatpush.msra.mxu0 %v455
  %483 = vmatpush.msra.mxu0 %v454
  %484 = vmatpush.msra.mxu0 %v453
  %485 = vmatmul.f32.gmra.mxu0 %v467
  %v486 = vpop.f32.mrf.mxu0
  %v487 = vadd.f32 %v463, %v486
  %488 = vdwg.mxu0
  %vm489 = vcmask 1024
  %490 = vst.msk [vmem:[%s21] sm:$0x3] %vm489, %v487
  // Predicated region
  $region86: #{attention_classifier_pallas.1} parent=0 // pred_check
    _
  $region87: #{attention_classifier_pallas.1} parent=0 // pred_check_branch
    %492 = sbr.rel (0) target = $region89
  $region88: #{attention_classifier_pallas.1} parent=0 // pred_region
    _
  $region89: #{attention_classifier_pallas.1} parent=0 // pred_fallthru
    _
  // Predicated region
  $region90: #{attention_classifier_pallas.1} parent=0 // pred_check
    _
  $region91: #{attention_classifier_pallas.1} parent=0 // pred_check_branch
    %494 = sbr.rel (0) target = $region93
  $region92: #{attention_classifier_pallas.1} parent=0 // pred_region
    _
  $region93: #{attention_classifier_pallas.1} parent=0 // pred_fallthru
    _

</llo_original>
